<compile_context>
chip_gen: v5e
topology: v5e:2x2
jax: 0.10.0
libtpu: 0.0.40
codegen_flags: <defaults>
</compile_context>

<pallas_src>
import functools

import jax
import jax.numpy as jnp
from jax import lax
from jax.experimental import pallas as pl
from jax.experimental.pallas import tpu as pltpu

_LANE = 128


def _round_up(x: int, m: int) -> int:
    return ((x + m - 1) // m) * m


def _balanced_tile(dim_pad: int, limit: int, gran: int):
    """Split dim_pad into equal tiles <= max(limit, gran), each a multiple of gran."""
    limit = max(limit, gran)
    steps = -(-dim_pad // limit)
    tile = _round_up(-(-dim_pad // steps), gran)
    return tile, tile * steps


def _vmem_budget_bytes() -> int:
    """~75% of physical VMEM (96 MiB v5e/v6e, 48 MiB v7x); conservative fallback."""
    try:
        phys = int(pltpu.get_tpu_info().vmem_capacity_bytes)
    except Exception:
        phys = 64 << 20  # assume the smallest (v7x per-TC) if the query fails
    return (phys * 3) // 4


def _linear_kernel(x_ref, w_ref, b_ref, o_ref):
    """Single pass over K: o[TM,TN] = x[TM,TK] @ w[TN,TK]^T + b[1,TN]."""
    acc = lax.dot_general(
        x_ref[...],
        w_ref[...],
        dimension_numbers=(((1,), (1,)), ((), ())),  # contract K of both (NT feed)
        preferred_element_type=jnp.float32,
    )
    o_ref[...] = (acc + b_ref[...]).astype(o_ref.dtype)


def _linear_kernel_ktiled(x_ref, w_ref, b_ref, o_ref, acc_ref):
    """K-tiled variant: grid (i, j, k) with an f32 VMEM accumulator across K."""
    k = pl.program_id(2)

    @pl.when(k == 0)
    def _zero():
        acc_ref[...] = jnp.zeros_like(acc_ref)

    acc_ref[...] += lax.dot_general(
        x_ref[...],
        w_ref[...],
        dimension_numbers=(((1,), (1,)), ((), ())),
        preferred_element_type=jnp.float32,
    )

    @pl.when(k == pl.num_programs(2) - 1)
    def _finalize():
        o_ref[...] = (acc_ref[...] + b_ref[...]).astype(o_ref.dtype)


@functools.partial(
    jax.jit, static_argnames=("tm", "tn", "tk", "compute_dtype", "force_pallas")
)
def regression_model_forward(x, weight, bias, *, tm=256, tn=512, tk=None,
                             compute_dtype=None, force_pallas=False):
    """Equivalent of torch.nn.Linear(D_in, D_out)(x): y = x @ weight.T + bias.

    x:      [B, D_in]
    weight: [D_out, D_in]   (PyTorch layout, NOT pre-transposed)
    bias:   [D_out]
    compute_dtype: dtype fed to the MXU (e.g. jnp.bfloat16); accumulation stays f32.
    tk:     optional hard cap on the K tile (forces the K-tiled accumulator path).
    """
    B, D_in = x.shape
    D_out, D_in_w = weight.shape
    assert D_in_w == D_in
    out_dtype = x.dtype

    # Small-problem bypass: a Pallas launch is pure overhead for toy shapes.
    if not force_pallas and 2 * B * D_in * D_out < (1 << 22):
        return (jnp.dot(x, weight.T) + bias).astype(out_dtype)

    cdtype = jnp.dtype(compute_dtype) if compute_dtype is not None else jnp.dtype(out_dtype)
    in_bytes = cdtype.itemsize
    out_bytes = jnp.dtype(out_dtype).itemsize
    sub = 16 if in_bytes == 2 else 8  # sublane packing of the compute dtype

    budget = _vmem_budget_bytes()

    # ---- tile selection -----------------------------------------------------
    # TM covers the whole (padded) batch whenever it fits under `tm`: grid_M == 1
    # minimizes HBM re-reads of the weight, the dominant stream for a linear layer.
    TM, M_pad = _balanced_tile(_round_up(B, sub), _round_up(tm, sub), sub)

    # TN in multiples of 256 when the dim allows (256x256 MXUs), else 128.
    N_pad0 = _round_up(D_out, _LANE)
    tn_lim = _round_up(tn, _LANE)
    gran_n = 256 if (N_pad0 >= 256 and tn_lim % 256 == 0) else _LANE
    TN, N_pad = _balanced_tile(N_pad0, tn_lim, gran_n)

    # TK: as large as the VMEM budget allows; collapse the K grid axis entirely
    # when the whole padded D_in fits (single-pass kernel, no accumulator).
    K_pad0 = _round_up(D_in, _LANE)
    fixed = (2 * TM * TN * out_bytes      # double-buffered output tile
             + 2 * TN * 4                 # double-buffered f32 bias tile
             + TM * TN * 4                # f32 accumulator (only used if K-tiled)
             + (2 << 20))                 # slack for Mosaic internal scratch
    tk_fit = max(((budget - fixed) // (2 * in_bytes * (TM + TN))) // _LANE * _LANE,
                 _LANE)
    tk_limit = min(tk_fit, _round_up(tk, _LANE)) if tk is not None else tk_fit

    if tk_limit >= K_pad0:
        k_tiled = False
        TK, K_pad = K_pad0, K_pad0
    else:
        k_tiled = True
        gran_k = 256 if (tk_limit >= 256 and tk_limit % 256 == 0) else _LANE
        TK, K_pad = _balanced_tile(K_pad0, tk_limit, gran_k)

    # Actual VMEM use (double-buffer factors counted exactly once).
    used = (2 * (TM + TN) * TK * in_bytes        # x and w tiles, double-buffered
            + 2 * TN * 4                         # bias
            + 2 * TM * TN * out_bytes            # output
            + (TM * TN * 4 if k_tiled else 0))   # accumulator scratch
    vmem_limit = int(min(max(used + (2 << 20), 8 << 20), budget))

    # ---- pad / cast in the wrapper (no-ops when already aligned) ------------
    x_c = x.astype(cdtype)
    w_c = weight.astype(cdtype)
    if (M_pad, K_pad) != (B, D_in):
        x_c = jnp.pad(x_c, ((0, M_pad - B), (0, K_pad - D_in)))
    if (N_pad, K_pad) != (D_out, D_in):
        w_c = jnp.pad(w_c, ((0, N_pad - D_out), (0, K_pad - D_in)))
    b2 = bias.astype(jnp.float32).reshape(1, D_out)
    if N_pad != D_out:
        b2 = jnp.pad(b2, ((0, 0), (0, N_pad - D_out)))

    grid_m, grid_n = M_pad // TM, N_pad // TN
    grid_k = K_pad // TK if k_tiled else 1

    cost = pl.CostEstimate(
        flops=2 * M_pad * N_pad * K_pad,
        transcendentals=0,
        bytes_accessed=(M_pad * K_pad * in_bytes * grid_n    # x re-streamed per j
                        + N_pad * K_pad * in_bytes * grid_m  # w re-streamed per i
                        + M_pad * N_pad * out_bytes
                        + N_pad * 4 * grid_m),
    )

    if k_tiled:
        grid = (grid_m, grid_n, grid_k)
        in_specs = [
            pl.BlockSpec((TM, TK), lambda i, j, k: (i, k)),   # activation tile
            pl.BlockSpec((TN, TK), lambda i, j, k: (j, k)),   # weight tile (untransposed)
            pl.BlockSpec((1, TN), lambda i, j, k: (0, j)),    # bias tile (j only)
        ]
        out_spec = pl.BlockSpec((TM, TN), lambda i, j, k: (i, j))
        scratch = [pltpu.VMEM((TM, TN), jnp.float32)]
        kernel = _linear_kernel_ktiled
        semantics = ("parallel", "parallel", "arbitrary")
    else:
        grid = (grid_m, grid_n)
        in_specs = [
            pl.BlockSpec((TM, TK), lambda i, j: (i, 0)),
            pl.BlockSpec((TN, TK), lambda i, j: (j, 0)),
            pl.BlockSpec((1, TN), lambda i, j: (0, j)),
        ]
        out_spec = pl.BlockSpec((TM, TN), lambda i, j: (i, j))
        scratch = []
        kernel = _linear_kernel
        semantics = ("parallel", "parallel")

    out_padded = pl.pallas_call(
        kernel,
        out_shape=jax.ShapeDtypeStruct((M_pad, N_pad), out_dtype),
        grid_spec=pltpu.PrefetchScalarGridSpec(
            num_scalar_prefetch=0,
            grid=grid,
            in_specs=in_specs,
            out_specs=out_spec,
            scratch_shapes=scratch,
        ),
        compiler_params=pltpu.CompilerParams(
            dimension_semantics=semantics,
            vmem_limit_bytes=vmem_limit,
        ),
        cost_estimate=cost,
    )(x_c, w_c, b2)

    if (M_pad, N_pad) != (B, D_out):
        return out_padded[:B, :D_out]
    return out_padded


if __name__ == "__main__":
    # --- check 1: toy shape from the module, f32, single-pass kernel ---------
    B, D_in, D_out = 8, 32, 16
    key = jax.random.PRNGKey(0)
    kx, kw, kb = jax.random.split(key, 3)

    # Deterministic init mimicking torch.nn.Linear default (U[-1/sqrt(D_in), 1/sqrt(D_in)]).
    bound = 1.0 / jnp.sqrt(jnp.float32(D_in))
    weight = jax.random.uniform(kw, (D_out, D_in), jnp.float32, -bound, bound)
    bias = jax.random.uniform(kb, (D_out,), jnp.float32, -bound, bound)
    x = jax.random.normal(kx, (B, D_in), jnp.float32)

    y = regression_model_forward(x, weight, bias, force_pallas=True)
    jax.block_until_ready(y)
    y_ref = x @ weight.T + bias
    assert y.shape == (B, D_out)
    assert jnp.allclose(y, y_ref, atol=1e-5, rtol=1e-5)

    # --- check 2: K-tiled accumulator path (tk cap forces 2 K steps), f32 ----
    B2, D_in2, D_out2 = 16, 512, 256
    kx2, kw2, kb2 = jax.random.split(jax.random.PRNGKey(1), 3)
    bound2 = 1.0 / jnp.sqrt(jnp.float32(D_in2))
    w2 = jax.random.uniform(kw2, (D_out2, D_in2), jnp.float32, -bound2, bound2)
    b2 = jax.random.uniform(kb2, (D_out2,), jnp.float32, -bound2, bound2)
    x2 = jax.random.normal(kx2, (B2, D_in2), jnp.float32)

    y2 = regression_model_forward(x2, w2, b2, tk=256, force_pallas=True)
    jax.block_until_ready(y2)
    y2_ref = x2 @ w2.T + b2
    assert jnp.allclose(y2, y2_ref, atol=1e-4, rtol=1e-4)

    # --- check 3: bf16 MXU feed (f32 accumulation), single-pass path ---------
    y3 = regression_model_forward(x2, w2, b2, compute_dtype=jnp.bfloat16,
                                  force_pallas=True)
    jax.block_until_ready(y3)
    assert jnp.allclose(y3, y2_ref, atol=5e-2, rtol=5e-2)

    print("KERNEL_OK")
</pallas_src>

<mosaic_0001>
module attributes {stable_mosaic.version = 11 : i64} {
  func.func @_linear_kernel(%arg0: i32, %arg1: i32, %arg2: memref<8x128xf32, #tpu.memory_space<vmem>>, %arg3: memref<128x128xf32, #tpu.memory_space<vmem>>, %arg4: memref<1x128xf32, #tpu.memory_space<vmem>>, %arg5: memref<8x128xf32, #tpu.memory_space<vmem>>) attributes {dimension_semantics = [#tpu.dimension_semantics<parallel>, #tpu.dimension_semantics<parallel>], iteration_bounds = array<i64: 1, 1>, scalar_prefetch = 0 : i64, scratch_operands = 0 : i64, tpu.core_type = #tpu.core_type<tc>, window_params = [{transform_indices = @transform_0, window_bounds = array<i64: 8, 128>}, {transform_indices = @transform_1, window_bounds = array<i64: 128, 128>}, {transform_indices = @transform_2, window_bounds = array<i64: 1, 128>}, {transform_indices = @transform_3, window_bounds = array<i64: 8, 128>}]} {
    %c0 = arith.constant 0 : index
    %c0_0 = arith.constant 0 : index
    %0 = vector.load %arg2[%c0, %c0_0] : memref<8x128xf32, #tpu.memory_space<vmem>>, vector<8x128xf32>
    %c0_1 = arith.constant 0 : index
    %c0_2 = arith.constant 0 : index
    %1 = vector.load %arg3[%c0_1, %c0_2] : memref<128x128xf32, #tpu.memory_space<vmem>>, vector<128x128xf32>
    %cst = arith.constant dense<0.000000e+00> : vector<8x128xf32>
    %2 = tpu.matmul %0, %1, %cst {dimension_numbers = #tpu.dot_dimension_numbers<[1], [1], [0], [0], [0, 0, 1, 0], [], []>} : vector<8x128xf32>, vector<128x128xf32>, vector<8x128xf32> -> vector<8x128xf32>
    %c0_3 = arith.constant 0 : index
    %c0_4 = arith.constant 0 : index
    %3 = vector.load %arg4[%c0_3, %c0_4] : memref<1x128xf32, #tpu.memory_space<vmem>>, vector<1x128xf32>
    %4 = vector.broadcast %3 : vector<1x128xf32> to vector<8x128xf32>
    %5 = arith.addf %2, %4 : vector<8x128xf32>
    %c0_5 = arith.constant 0 : index
    %c0_6 = arith.constant 0 : index
    %6 = vector.load %arg5[%c0_5, %c0_6] : memref<8x128xf32, #tpu.memory_space<vmem>>, vector<8x128xf32>
    tpu.vector_store %arg5[%c0_5, %c0_6], %5 {strides = array<i32>} : memref<8x128xf32, #tpu.memory_space<vmem>>, vector<8x128xf32>,
    return
  }
  func.func @transform_0(%arg0: i32, %arg1: i32) -> (i32, i32) {
    %c0_i32 = arith.constant 0 : i32
    %c0_i32_0 = arith.constant 0 : i32
    return %arg0, %c0_i32 : i32, i32
  }
  func.func @transform_1(%arg0: i32, %arg1: i32) -> (i32, i32) {
    %c0_i32 = arith.constant 0 : i32
    %c0_i32_0 = arith.constant 0 : i32
    return %arg1, %c0_i32 : i32, i32
  }
  func.func @transform_2(%arg0: i32, %arg1: i32) -> (i32, i32) {
    %c0_i32 = arith.constant 0 : i32
    %c0_i32_0 = arith.constant 0 : i32
    return %c0_i32, %arg1 : i32, i32
  }
  func.func @transform_3(%arg0: i32, %arg1: i32) -> (i32, i32) {
    %c0_i32 = arith.constant 0 : i32
    return %arg0, %arg1 : i32, i32
  }
}

</mosaic_0001>

<llo_original>
// kernel: regression_model_forward.1
$region0: #{regression_model_forward.1}
  #allocation0 [shape = 'u32[]', space=smem, size = 0x4, offset = 0x4, fixed_abs, tag = 'smem constant byte address 0x4 - core index']
  #allocation1 [shape = 'u32[72,128]{1,0:T(1,128)}', space=vmem, size = 0x9000, scoped, tag = 'internal scratch']
  %s0 = inlined_call_operand.vmem [shape: f32[8,128], index: 0, kind: input, shape index: {}]
  %s1 = inlined_call_operand.vmem [shape: f32[128,128], index: 1, kind: input, shape index: {}]
  %s2 = inlined_call_operand.vmem [shape: f32[1,128], index: 2, kind: input, shape index: {}]
  %s3 = inlined_call_operand.hbm [shape: f32[8,128], index: 3, kind: output, shape index: {}]
  %s4 = sld [smem:[#allocation0]]
  $region22: #{regression_model_forward.1} parent=0
    _
  %s6 = ssub.s32 1, %s4
  %s7 = scalar_select 0, %s6, %s4
  $region1: #{regression_model_forward.1} parent=0
    #allocation2 [shape = 'u8[4096]{0}', space=vmem, size = 0x1000, scoped, tag = 'output window, operand 0, single buffered']
    #allocation3 [shape = 's32[1]{0}', space=sflag, size = 0x4, scoped, tag = 'scoped memory for regression_model_forward.1']
    %8 = vsyncpa [#allocation3], 0
    // Predicated region
    $region2: #{regression_model_forward.1} parent=1 // pred_check
      _
    $region3: #{regression_model_forward.1} parent=1 // pred_check_branch
      %10 = sbr.rel (0) target = $region5
    $region4: #{regression_model_forward.1} parent=1 // pred_region
      _
    $region5: #{regression_model_forward.1} parent=1 // pred_fallthru
      _
    // Predicated region
    $region6: #{regression_model_forward.1} parent=1 // pred_check
      _
    $region7: #{regression_model_forward.1} parent=1 // pred_check_branch
      %12 = sbr.rel (0) target = $region9
    $region8: #{regression_model_forward.1} parent=1 // pred_region
      _
    $region9: #{regression_model_forward.1} parent=1 // pred_fallthru
      _
    // Predicated region
    $region10: #{regression_model_forward.1} parent=1 // pred_check
      _
    $region11: #{regression_model_forward.1} parent=1 // pred_check_branch
      %14 = sbr.rel (0) target = $region13
    $region12: #{regression_model_forward.1} parent=1 // pred_region
      _
    $region13: #{regression_model_forward.1} parent=1 // pred_fallthru
      _
    %v15 = vld [vmem:[%s0] sm:$0xff]
    %v16 = vld [vmem:[%s1] sm:$0xff]
    %v17 = vld [vmem:[%s1 + $0x8] sm:$0xff]
    %v18 = vld [vmem:[%s1 + $0x10] sm:$0xff]
    %v19 = vld [vmem:[%s1 + $0x18] sm:$0xff]
    %v20 = vld [vmem:[%s1 + $0x20] sm:$0xff]
    %v21 = vld [vmem:[%s1 + $0x28] sm:$0xff]
    %v22 = vld [vmem:[%s1 + $0x30] sm:$0xff]
    %v23 = vld [vmem:[%s1 + $0x38] sm:$0xff]
    %v24 = vld [vmem:[%s1 + $0x40] sm:$0xff]
    %v25 = vld [vmem:[%s1 + $0x48] sm:$0xff]
    %v26 = vld [vmem:[%s1 + $0x50] sm:$0xff]
    %v27 = vld [vmem:[%s1 + $0x58] sm:$0xff]
    %v28 = vld [vmem:[%s1 + $0x60] sm:$0xff]
    %v29 = vld [vmem:[%s1 + $0x68] sm:$0xff]
    %v30 = vld [vmem:[%s1 + $0x70] sm:$0xff]
    %v31 = vld [vmem:[%s1 + $0x78] sm:$0xff]
    %v32 = vld [vmem:[%s2] sm:$0x1]
    %v34 = vperm.slane %v32, 0
    %36 = vmatpush.xpose.msra.mxu0 %v31
    %37 = vmatpush.xpose.msra.mxu0 %v30
    %38 = vmatpush.xpose.msra.mxu0 %v29
    %39 = vmatpush.xpose.msra.mxu0 %v28
    %40 = vmatpush.xpose.msra.mxu0 %v27
    %41 = vmatpush.xpose.msra.mxu0 %v26
    %42 = vmatpush.xpose.msra.mxu0 %v25
    %43 = vmatpush.xpose.msra.mxu0 %v24
    %44 = vmatpush.xpose.msra.mxu0 %v23
    %45 = vmatpush.xpose.msra.mxu0 %v22
    %46 = vmatpush.xpose.msra.mxu0 %v21
    %47 = vmatpush.xpose.msra.mxu0 %v20
    %48 = vmatpush.xpose.msra.mxu0 %v19
    %49 = vmatpush.xpose.msra.mxu0 %v18
    %50 = vmatpush.xpose.msra.mxu0 %v17
    %51 = vmatpush.xpose.msra.mxu0 %v16
    %52 = vmatmul.f32.gmra.mxu0 %v15
    %v53 = vpop.f32.mrf.mxu0
    %v54 = vadd.f32 %v34, %v53
    %55 = vdwg.mxu0
    %56 = vst [vmem:[#allocation2] sm:$0xff] %v54
    // Predicated region
    $region14: #{regression_model_forward.1} parent=1 // pred_check
      _
    $region15: #{regression_model_forward.1} parent=1 // pred_check_branch
      %58 = sbr.rel (0) target = $region17
    $region16: #{regression_model_forward.1} parent=1 // pred_region
      %60 = vsyncadd [#allocation3], 0
      %s62 = sshll.u32 [#allocation2], 4
      %s63 = int_to_ptr.vmem [resolvable:$true] %s62
      %s64 = sshll.u32 %s3, 4
      %s65 = int_to_ptr.hbm [resolvable:$true] %s64
      %67 = dma.vmem_to_hbm [thread:$0]  %s63, 128, %s65, [#allocation3]
    $region17: #{regression_model_forward.1} parent=1 // pred_fallthru
      _
    // Predicated region
    $region18: #{regression_model_forward.1} parent=1 // pred_check
      _
    $region19: #{regression_model_forward.1} parent=1 // pred_check_branch
      %69 = sbr.rel (0) target = $region21
    $region20: #{regression_model_forward.1} parent=1 // pred_region
      %71 = dma.done [#allocation3], 128
    $region21: #{regression_model_forward.1} parent=1 // pred_fallthru
      _
    %72 = vsyncpa [#allocation3], 1

</llo_original>
